<compile_context>
chip_gen: v7x
topology: tpu7x:2x2x1
jax: 0.10.0
libtpu: 0.0.40
codegen_flags: <defaults>
</compile_context>

<pallas_src>
import functools

import jax
import jax.numpy as jnp
from jax.experimental import pallas as pl
from jax.experimental.pallas import tpu as pltpu

FEATURE_DIM = 1280     # efficientnet_lite0 feature dim fed to the classifier
LANE = 128             # TPU lane width
SUBLANE = 8            # f32 sublane granularity


def _round_up(n, m):
    return (n + m - 1) // m * m


def _choose_batch_tile(batch, row_bytes):
    """Pick the batch-tile size TB for the grid.

    Targets ~4 MiB per x tile so the 2x double-buffered input plus the output
    tile fits comfortably inside every generation's scoped VMEM, and caps TB
    at 256 rows (a full MXU/VPU-friendly M tile is irrelevant here since the
    matmul is precomposed away, but 256 keeps per-step overhead amortized).
    """
    max_rows_by_vmem = max(SUBLANE, (4 << 20) // max(row_bytes, 1))
    tb = min(256, max_rows_by_vmem)
    tb = max(SUBLANE, (tb // SUBLANE) * SUBLANE)   # keep sublane-aligned
    if batch <= tb:
        # Single block: block dim == full array dim is always layout-legal,
        # and a <8-row masked output store is negligible.
        return batch
    return tb


# ----------------------------------------------------------------------------
# Fused Pallas kernel: pooled-backbone stub composed with the classifier
# ----------------------------------------------------------------------------
def fused_forward_kernel(x_ref, w_ref, b_ref, o_ref):
    """One batch tile of the forward pass.

    x_ref : [TB, C*HW] f32  input tile (lane axis = C*HW, dense)
    w_ref : [C, Np]    f32  composed weight  (backbone_w @ cls_w) / HW
    b_ref : [1, Np]    f32  composed bias    backbone_b @ cls_w + cls_b
    o_ref : [TB, Np]   f32  padded logits tile
    """
    num_c = w_ref.shape[0]
    hw = x_ref.shape[1] // num_c
    x = x_ref[...]

    # Channel-wise spatial sums (1/HW is folded into w_ref), then C broadcast
    # FMAs on the VPU.  K = C (= 3) is far too small to feed the MXU.
    acc = None
    for c in range(num_c):
        s_c = jnp.sum(x[:, c * hw:(c + 1) * hw], axis=-1, keepdims=True)  # [TB, 1]
        term = s_c * w_ref[c:c + 1, :]                                    # [TB, Np]
        acc = term if acc is None else acc + term

    # MultiDropoutLinearBlock: the PyTorch loop computes linear(x) drop_num
    # times (the Dropout output is never used) and divides by drop_num, which
    # is exactly linear(x) -- the dropout is a no-op by construction.
    o_ref[...] = acc + b_ref[...]


# ----------------------------------------------------------------------------
# Wrapper
# ----------------------------------------------------------------------------
@functools.partial(jax.jit, static_argnames=("classes",))
def multi_dropout_efficient_lite0_forward(x_nchw, params, classes=18):
    B, C, H, W = x_nchw.shape
    HW = H * W
    CHW = C * HW

    # Contiguous reshape (free) -- no padding, no extra HBM traffic.
    x_flat = x_nchw.reshape(B, CHW).astype(jnp.float32)

    # Precompose the linear backbone stub with the classifier (f32), folding
    # the 1/HW of the global average pool into the weight.  Tiny XLA matmul
    # ([C,1280] @ [1280,Np]) per call; fused into the surrounding jit.
    w_comb = (params["backbone_w"] @ params["cls_w"]) * (1.0 / HW)      # [C, Np]
    b_comb = params["backbone_b"] @ params["cls_w"] + params["cls_b"]   # [1, Np]
    n_pad = w_comb.shape[1]

    TB = _choose_batch_tile(B, CHW * 4)
    grid = (pl.cdiv(B, TB),)

    # Size scoped VMEM from the actual tiles (x/out double-buffered + weights).
    x_tile_bytes = TB * CHW * 4
    out_tile_bytes = TB * n_pad * 4
    w_bytes = (C + 1) * n_pad * 4
    vmem_bytes = 2 * (x_tile_bytes + out_tile_bytes) + w_bytes + (1 << 20)
    vmem_limit = int(min(max(vmem_bytes, 4 << 20), 32 << 20))

    out_padded = pl.pallas_call(
        fused_forward_kernel,
        out_shape=jax.ShapeDtypeStruct((B, n_pad), jnp.float32),
        grid=grid,
        in_specs=[
            pl.BlockSpec((TB, CHW), lambda i: (i, 0)),      # streamed batch tile
            pl.BlockSpec((C, n_pad), lambda i: (0, 0)),     # VMEM-resident weight
            pl.BlockSpec((1, n_pad), lambda i: (0, 0)),     # VMEM-resident bias
        ],
        out_specs=pl.BlockSpec((TB, n_pad), lambda i: (i, 0)),
        compiler_params=pltpu.CompilerParams(
            dimension_semantics=("parallel",),              # megacore on v7x
            vmem_limit_bytes=vmem_limit,
        ),
    )(x_flat, w_comb, b_comb)

    return out_padded[:, :classes]                          # [B, classes]


# ----------------------------------------------------------------------------
# Deterministic parameter initialization
# ----------------------------------------------------------------------------
def init_params(key, in_channels=3, classes=18):
    k_wb, k_bb, k_wc, k_bc = jax.random.split(key, 4)
    n_pad = _round_up(classes, LANE)

    backbone_w = 0.02 * jax.random.normal(
        k_wb, (in_channels, FEATURE_DIM), jnp.float32)
    backbone_b = 0.02 * jax.random.normal(k_bb, (1, FEATURE_DIM), jnp.float32)

    # Classifier: nn.Linear(1280, classes).weight is [classes, 1280]; stored
    # pre-transposed as [1280, classes] and zero-padded to [1280, n_pad] so
    # the composed weight (and the kernel output) is lane-dense.  Kept f32.
    w = 0.02 * jax.random.normal(k_wc, (FEATURE_DIM, classes), jnp.float32)
    b = 0.02 * jax.random.normal(k_bc, (1, classes), jnp.float32)
    cls_w = jnp.zeros((FEATURE_DIM, n_pad), jnp.float32).at[:, :classes].set(w)
    cls_b = jnp.zeros((1, n_pad), jnp.float32).at[:, :classes].set(b)

    return dict(
        backbone_w=backbone_w,
        backbone_b=backbone_b,
        cls_w=cls_w,
        cls_b=cls_b,
    )


# ----------------------------------------------------------------------------
# Pure-JAX reference for a sanity check (un-composed path)
# ----------------------------------------------------------------------------
def reference_forward(x_nchw, params, classes=18):
    B, C, H, W = x_nchw.shape
    pooled = jnp.mean(x_nchw.reshape(B, C, H * W), axis=-1)
    feats = pooled @ params["backbone_w"] + params["backbone_b"]
    w = params["cls_w"][:, :classes]
    b = params["cls_b"][:, :classes]
    # MultiDropoutLinearBlock averages drop_num identical linear(x) outputs.
    return feats @ w + b


if __name__ == "__main__":
    key = jax.random.PRNGKey(0)
    k_x, k_p = jax.random.split(key)

    B, C, H, W = 2, 3, 16, 16
    classes = 18
    x = jax.random.normal(k_x, (B, C, H, W), jnp.float32)
    params = init_params(k_p, in_channels=C, classes=classes)

    out = multi_dropout_efficient_lite0_forward(x, params, classes=classes)
    out = jax.block_until_ready(out)
    assert out.shape == (B, classes), out.shape

    ref = reference_forward(x, params, classes=classes)
    max_err = float(jnp.max(jnp.abs(out - ref)))
    # Everything is f32 now; only the composition order differs from the
    # reference, so the tolerance is tight.
    assert jnp.allclose(out, ref, atol=1e-4, rtol=1e-3), max_err

    print("KERNEL_OK")
</pallas_src>

<mosaic_0001>
module attributes {stable_mosaic.version = 11 : i64} {
  func.func @fused_forward_kernel(%arg0: i32, %arg1: memref<2x768xf32, #tpu.memory_space<vmem>>, %arg2: memref<3x128xf32, #tpu.memory_space<vmem>>, %arg3: memref<1x128xf32, #tpu.memory_space<vmem>>, %arg4: memref<2x128xf32, #tpu.memory_space<vmem>>) attributes {dimension_semantics = [#tpu.dimension_semantics<parallel>], iteration_bounds = array<i64: 1>, scalar_prefetch = 0 : i64, scratch_operands = 0 : i64, tpu.core_type = #tpu.core_type<tc>, window_params = [{transform_indices = @transform_0, window_bounds = array<i64: 2, 768>}, {pipeline_mode = #tpu.pipeline_mode<synchronous>, transform_indices = @transform_1, window_bounds = array<i64: 3, 128>}, {pipeline_mode = #tpu.pipeline_mode<synchronous>, transform_indices = @transform_2, window_bounds = array<i64: 1, 128>}, {transform_indices = @transform_3, window_bounds = array<i64: 2, 128>}]} {
    %c0 = arith.constant 0 : index
    %c0_0 = arith.constant 0 : index
    %0 = vector.load %arg1[%c0, %c0_0] : memref<2x768xf32, #tpu.memory_space<vmem>>, vector<2x768xf32>
    %1 = vector.extract_strided_slice %0 {offsets = [0, 0], sizes = [2, 256], strides = [1, 1]} : vector<2x768xf32> to vector<2x256xf32>
    %cst = arith.constant dense<0.000000e+00> : vector<2xf32>
    %2 = vector.multi_reduction <add>, %1, %cst [1] : vector<2x256xf32> to vector<2xf32>
    %3 = vector.shape_cast %2 : vector<2xf32> to vector<2x1xf32>
    %c0_1 = arith.constant 0 : index
    %c0_2 = arith.constant 0 : index
    %4 = vector.load %arg2[%c0_1, %c0_2] : memref<3x128xf32, #tpu.memory_space<vmem>>, vector<1x128xf32>
    %5 = vector.broadcast %3 : vector<2x1xf32> to vector<2x128xf32>
    %6 = vector.broadcast %4 : vector<1x128xf32> to vector<2x128xf32>
    %7 = arith.mulf %5, %6 : vector<2x128xf32>
    %8 = vector.extract_strided_slice %0 {offsets = [0, 256], sizes = [2, 256], strides = [1, 1]} : vector<2x768xf32> to vector<2x256xf32>
    %cst_3 = arith.constant dense<0.000000e+00> : vector<2xf32>
    %9 = vector.multi_reduction <add>, %8, %cst_3 [1] : vector<2x256xf32> to vector<2xf32>
    %10 = vector.shape_cast %9 : vector<2xf32> to vector<2x1xf32>
    %c1 = arith.constant 1 : index
    %c0_4 = arith.constant 0 : index
    %11 = vector.load %arg2[%c1, %c0_4] : memref<3x128xf32, #tpu.memory_space<vmem>>, vector<1x128xf32>
    %12 = vector.broadcast %10 : vector<2x1xf32> to vector<2x128xf32>
    %13 = vector.broadcast %11 : vector<1x128xf32> to vector<2x128xf32>
    %14 = arith.mulf %12, %13 : vector<2x128xf32>
    %15 = arith.addf %7, %14 : vector<2x128xf32>
    %16 = vector.extract_strided_slice %0 {offsets = [0, 512], sizes = [2, 256], strides = [1, 1]} : vector<2x768xf32> to vector<2x256xf32>
    %cst_5 = arith.constant dense<0.000000e+00> : vector<2xf32>
    %17 = vector.multi_reduction <add>, %16, %cst_5 [1] : vector<2x256xf32> to vector<2xf32>
    %18 = vector.shape_cast %17 : vector<2xf32> to vector<2x1xf32>
    %c2 = arith.constant 2 : index
    %c0_6 = arith.constant 0 : index
    %19 = vector.load %arg2[%c2, %c0_6] : memref<3x128xf32, #tpu.memory_space<vmem>>, vector<1x128xf32>
    %20 = vector.broadcast %18 : vector<2x1xf32> to vector<2x128xf32>
    %21 = vector.broadcast %19 : vector<1x128xf32> to vector<2x128xf32>
    %22 = arith.mulf %20, %21 : vector<2x128xf32>
    %23 = arith.addf %15, %22 : vector<2x128xf32>
    %c0_7 = arith.constant 0 : index
    %c0_8 = arith.constant 0 : index
    %24 = vector.load %arg3[%c0_7, %c0_8] : memref<1x128xf32, #tpu.memory_space<vmem>>, vector<1x128xf32>
    %25 = vector.broadcast %24 : vector<1x128xf32> to vector<2x128xf32>
    %26 = arith.addf %23, %25 : vector<2x128xf32>
    %c0_9 = arith.constant 0 : index
    %c0_10 = arith.constant 0 : index
    %27 = vector.load %arg4[%c0_9, %c0_10] : memref<2x128xf32, #tpu.memory_space<vmem>>, vector<2x128xf32>
    tpu.vector_store %arg4[%c0_9, %c0_10], %26 {strides = array<i32>} : memref<2x128xf32, #tpu.memory_space<vmem>>, vector<2x128xf32>,
    return
  }
  func.func @transform_0(%arg0: i32) -> (i32, i32) {
    %c0_i32 = arith.constant 0 : i32
    %c0_i32_0 = arith.constant 0 : i32
    return %arg0, %c0_i32 : i32, i32
  }
  func.func @transform_1(%arg0: i32) -> (i32, i32) {
    %c0_i32 = arith.constant 0 : i32
    %c0_i32_0 = arith.constant 0 : i32
    %c0_i32_1 = arith.constant 0 : i32
    return %c0_i32, %c0_i32_0 : i32, i32
  }
  func.func @transform_2(%arg0: i32) -> (i32, i32) {
    %c0_i32 = arith.constant 0 : i32
    %c0_i32_0 = arith.constant 0 : i32
    %c0_i32_1 = arith.constant 0 : i32
    return %c0_i32, %c0_i32_0 : i32, i32
  }
  func.func @transform_3(%arg0: i32) -> (i32, i32) {
    %c0_i32 = arith.constant 0 : i32
    %c0_i32_0 = arith.constant 0 : i32
    return %arg0, %c0_i32 : i32, i32
  }
}

</mosaic_0001>

<llo_original>
// kernel: multi_dropout_efficient_lite0_forward.1
$region0: #{multi_dropout_efficient_lite0_forward.1}
  #allocation0 [shape = 'u32[]', space=smem, size = 0x4, offset = 0x4, fixed_abs, tag = 'smem constant byte address 0x4 - core index']
  #allocation1 [shape = 'u32[144,128]{1,0:T(1,128)}', space=vmem, size = 0x12000, scoped, tag = 'internal scratch']
  %s0 = inlined_call_operand.vmem [shape: f32[2,768], index: 0, kind: input, shape index: {}]
  %s1 = inlined_call_operand.vmem [shape: f32[3,128], index: 1, kind: input, shape index: {}]
  %s2 = inlined_call_operand.vmem [shape: f32[1,128], index: 2, kind: input, shape index: {}]
  %s3 = inlined_call_operand.hbm [shape: f32[2,128], index: 3, kind: output, shape index: {}]
  %s4 = sld [smem:[#allocation0]]
  $region22: #{multi_dropout_efficient_lite0_forward.1} parent=0
    _
  %s6 = ssub.s32 1, %s4
  %s7 = scalar_select 0, %s6, %s4
  $region1: #{multi_dropout_efficient_lite0_forward.1} parent=0
    #allocation2 [shape = 'u8[1024]{0}', space=vmem, size = 0x400, scoped, tag = 'output window, operand 0, single buffered']
    #allocation3 [shape = 's32[1]{0}', space=sflag, size = 0x4, scoped, tag = 'scoped memory for multi_dropout_efficient_lite0_forward.1']
    %8 = vsyncpa [#allocation3], 0
    // Predicated region
    $region2: #{multi_dropout_efficient_lite0_forward.1} parent=1 // pred_check
      _
    $region3: #{multi_dropout_efficient_lite0_forward.1} parent=1 // pred_check_branch
      %10 = sbr.rel (0) target = $region5
    $region4: #{multi_dropout_efficient_lite0_forward.1} parent=1 // pred_region
      _
    $region5: #{multi_dropout_efficient_lite0_forward.1} parent=1 // pred_fallthru
      _
    // Predicated region
    $region6: #{multi_dropout_efficient_lite0_forward.1} parent=1 // pred_check
      _
    $region7: #{multi_dropout_efficient_lite0_forward.1} parent=1 // pred_check_branch
      %12 = sbr.rel (0) target = $region9
    $region8: #{multi_dropout_efficient_lite0_forward.1} parent=1 // pred_region
      _
    $region9: #{multi_dropout_efficient_lite0_forward.1} parent=1 // pred_fallthru
      _
    // Predicated region
    $region10: #{multi_dropout_efficient_lite0_forward.1} parent=1 // pred_check
      _
    $region11: #{multi_dropout_efficient_lite0_forward.1} parent=1 // pred_check_branch
      %14 = sbr.rel (0) target = $region13
    $region12: #{multi_dropout_efficient_lite0_forward.1} parent=1 // pred_region
      _
    $region13: #{multi_dropout_efficient_lite0_forward.1} parent=1 // pred_fallthru
      _
    %v15 = vld [vmem:[%s0] sm:$0xff]
    %v16 = vld [vmem:[%s0 + $0x8] sm:$0xf]
    %v19 = vunpack.c.l.s4 1983009808
    %v20 = vunpack.c.0.s8 %v19
    %v21 = vlaneseq
    %v22 = vshrl.u32 %v21, 7
    %v23 = vsub.s32 %v20, %v22
    %v24 = vrot.slane %v15, %v23
    %v25 = vcombine.high %v24, %v24
    %vm28 = vcmask 1041408
    %v29 = vsel %vm28, %v24, 0.0
    %v30 = vsel %vm28, %v25, 0.0
    %v31 = vadd.f32 %v29, %v30
    %32 = vadd.xlane.f32.xlu0 %v31
    %v33 = vpop.xlane.xlu0 %32
    %v34 = vld [vmem:[%s1] sm:$0x1]
    %v35 = vlaneseq
    %v36 = vshrl.u32 %v35, 7
    %v37 = vsub.s32 0, %v36
    %v38 = vrot.slane %v34, %v37
    %v39 = vmul.f32 %v33, %v38
    %v40 = vcombine.high %v15, %v15
    %v42 = vunpack.c.l.s4 1983009808
    %v43 = vunpack.c.0.s8 %v42
    %v44 = vlaneseq
    %v45 = vshrl.u32 %v44, 7
    %v46 = vsub.s32 %v43, %v45
    %v47 = vrot.slane %v40, %v46
    %v48 = vcombine.high %v47, %v47
    %v51 = vsel %vm28, %v47, 0.0
    %v52 = vsel %vm28, %v48, 0.0
    %v53 = vadd.f32 %v51, %v52
    %54 = vadd.xlane.f32.xlu0 %v53
    %v55 = vpop.xlane.xlu0 %54
    %v56 = vld [vmem:[%s1 + $0x1] sm:$0x1]
    %v57 = vlaneseq
    %v58 = vshrl.u32 %v57, 7
    %v59 = vsub.s32 0, %v58
    %v60 = vrot.slane %v56, %v59
    %v61 = vmul.f32 %v55, %v60
    %v62 = vadd.f32 %v39, %v61
    %v65 = vunpack.c.l.s4 1983009808
    %v66 = vunpack.c.0.s8 %v65
    %v67 = vlaneseq
    %v68 = vshrl.u32 %v67, 7
    %v69 = vsub.s32 %v66, %v68
    %v70 = vrot.slane %v16, %v69
    %v71 = vcombine.high %v70, %v70
    %v74 = vsel %vm28, %v70, 0.0
    %v75 = vsel %vm28, %v71, 0.0
    %v76 = vadd.f32 %v74, %v75
    %77 = vadd.xlane.f32.xlu0 %v76
    %v78 = vpop.xlane.xlu0 %77
    %v79 = vld [vmem:[%s1 + $0x2] sm:$0x1]
    %v80 = vlaneseq
    %v81 = vshrl.u32 %v80, 7
    %v82 = vsub.s32 0, %v81
    %v83 = vrot.slane %v79, %v82
    %v84 = vmul.f32 %v78, %v83
    %v85 = vadd.f32 %v62, %v84
    %v86 = vld [vmem:[%s2] sm:$0x1]
    %v88 = vlaneseq
    %v89 = vshrl.u32 %v88, 7
    %v90 = vsub.s32 0, %v89
    %v91 = vrot.slane %v86, %v90
    %v93 = vadd.f32 %v85, %v91
    %94 = vst [vmem:[#allocation2] sm:$0x3] %v93
    // Predicated region
    $region14: #{multi_dropout_efficient_lite0_forward.1} parent=1 // pred_check
      _
    $region15: #{multi_dropout_efficient_lite0_forward.1} parent=1 // pred_check_branch
      %96 = sbr.rel (0) target = $region17
    $region16: #{multi_dropout_efficient_lite0_forward.1} parent=1 // pred_region
      %s98 = ssub.s32 32, 32
      %99 = vsyncadd [#allocation3], %s98
      %s101 = sshll.u32 [#allocation2], 4
      %s102 = int_to_ptr.vmem [resolvable:$true] %s101
      %104 = dma.vmem_to_hbm [thread:$0]  %s102, 32, %s3, [#allocation3]
    $region17: #{multi_dropout_efficient_lite0_forward.1} parent=1 // pred_fallthru
      _
    // Predicated region
    $region18: #{multi_dropout_efficient_lite0_forward.1} parent=1 // pred_check
      _
    $region19: #{multi_dropout_efficient_lite0_forward.1} parent=1 // pred_check_branch
      %106 = sbr.rel (0) target = $region21
    $region20: #{multi_dropout_efficient_lite0_forward.1} parent=1 // pred_region
      %107 = dma.done [#allocation3], 32
    $region21: #{multi_dropout_efficient_lite0_forward.1} parent=1 // pred_fallthru
      _
    %108 = vsyncpa [#allocation3], 1

</llo_original>
